<compile_context>
chip_gen: v6e
topology: v6e:2x2x1
jax: 0.10.0
libtpu: 0.0.40
codegen_flags: <defaults>
</compile_context>

<pallas_src>
import jax
import jax.numpy as jnp
from jax import lax
import numpy as np
from jax.experimental import pallas as pl
from jax.experimental.pallas import tpu as pltpu


def _round_up(x: int, m: int) -> int:
    return (x + m - 1) // m * m


def _make_center_loss_kernel(alpha: float, B: int, D: int, tc: int):
    inv_bd = 1.0 / float(B * D)          # mean over the ORIGINAL (unpadded) B*D
    alpha = float(alpha)

    def kernel(labels_ref, features_ref, centers_ref,
               loss_ref, new_centers_ref, loss_acc_ref):
        k = pl.program_id(0)

        @pl.when(k == 0)
        def _init():
            loss_acc_ref[0] = 0.0

        labels = labels_ref[...]                        # (B, 1) int32
        lo = k * tc                                     # first class id of tile

        # (B, tc) one-hot for THIS class tile (pure VPU iota compare).
        class_ids = lo + lax.broadcasted_iota(jnp.int32, (B, tc), 1)
        onehot = (labels == class_ids).astype(jnp.float32)

        # 1.0 for samples whose label falls in this tile, else 0.0.
        in_tile = ((labels >= lo) & (labels < lo + tc)).astype(jnp.float32)

        centers = centers_ref[...]                      # (tc, Dp)
        features = features_ref[...]                    # (B, Dp)

        # Gather of the referenced (ORIGINAL) center rows: one MXU matmul.
        gathered = jnp.dot(onehot, centers,
                           preferred_element_type=jnp.float32)         # (B, Dp)
        # Rows whose label lives in another tile contribute exactly zero.
        diff = gathered - in_tile * features                           # (B, Dp)

        # Partial squared error; every sample is counted exactly once.
        loss_acc_ref[0] += jnp.sum(diff * diff)
        loss_ref[0] = loss_acc_ref[0] * inv_bd

        # centers.index_add_(0, labels, -alpha * diff / bincount[labels]):
        # fold alpha / count into the one-hot COLUMNS (lane broadcast of a
        # (1, tc) reciprocal), then scatter with one transposed MXU matmul
        # contracting over B.  Empty / padded classes are clamped to 1 and
        # get an exact-zero delta.
        counts = jnp.sum(onehot, axis=0, keepdims=True)                # (1, tc)
        scaled = onehot * (alpha / jnp.maximum(counts, 1.0))           # (B, tc)
        delta = lax.dot_general(scaled, diff,
                                dimension_numbers=(((0,), (0,)), ((), ())),
                                preferred_element_type=jnp.float32)    # (tc, Dp)
        new_centers_ref[...] = centers - delta

    return kernel


def center_loss(features, labels, centers, alpha, *, max_tile_classes: int = 2048):
    """Functional CenterLoss.forward: returns (loss, new_centers).

    NOTE: the (padded) centers table is donated to the output inside the
    pallas_call (input_output_aliases); the caller-visible `centers` array is
    untouched because the wrapper pads/copies it first.
    """
    B, D = features.shape
    C, D2 = centers.shape
    assert D == D2

    labels2d = labels.astype(jnp.int32).reshape(B, 1)

    # Lane-pad the feature dim so every (., D) tile is lane-dense.
    Dp = _round_up(max(D, 128), 128)

    # Generation-aware VMEM budget.
    try:
        vmem_cap = int(pltpu.get_tpu_info().vmem_capacity_bytes)
    except Exception:                       # interpret mode / older runtimes
        vmem_cap = 64 * 1024 * 1024
    budget = int(min(0.75 * vmem_cap, 100 * 1024 * 1024))

    # Rough footprint (f32): resident features/labels + temps, and per class
    # row the double-buffered centers in/out tiles + one-hot temps.
    fixed = 4 * (4 * B * Dp + 2 * B)
    per_row = 4 * (4 * Dp + 3 * B)
    tc_cap = max(8, (budget - fixed) // per_row)
    tc_cap = int(min(tc_cap, max_tile_classes))
    if C <= tc_cap:
        tc, Cp = C, C                        # single tile: block == full dim
    else:
        tc = max(8, (tc_cap // 8) * 8)       # sublane-aligned class tile
        Cp = _round_up(C, tc)

    feats_p = features.astype(jnp.float32)
    cents_p = centers.astype(jnp.float32)
    if Dp != D:
        feats_p = jnp.pad(feats_p, ((0, 0), (0, Dp - D)))
    if Dp != D or Cp != C:
        cents_p = jnp.pad(cents_p, ((0, Cp - C), (0, Dp - D)))

    num_tiles = Cp // tc
    kernel = _make_center_loss_kernel(float(alpha), B, D, tc)

    est_need = fixed + per_row * tc
    vmem_limit = int(min(max(2 * est_need, 32 * 1024 * 1024), budget))

    cost = pl.CostEstimate(
        flops=int(4 * B * Cp * Dp + 8 * B * Dp),          # gather + scatter matmuls
        transcendentals=0,
        bytes_accessed=int(4 * (2 * Cp * Dp + B * Dp + 2 * B) + 4),
    )

    loss, new_centers = pl.pallas_call(
        kernel,
        out_shape=(
            jax.ShapeDtypeStruct((1,), jnp.float32),       # scalar loss
            jax.ShapeDtypeStruct((Cp, Dp), jnp.float32),   # updated centers
        ),
        grid_spec=pltpu.PrefetchScalarGridSpec(
            num_scalar_prefetch=0,
            grid=(num_tiles,),
            in_specs=[
                pl.BlockSpec((B, 1), lambda k: (0, 0)),      # labels (resident)
                pl.BlockSpec((B, Dp), lambda k: (0, 0)),     # features (resident)
                pl.BlockSpec((tc, Dp), lambda k: (k, 0)),    # centers tile
            ],
            out_specs=(
                pl.BlockSpec(memory_space=pltpu.MemorySpace.SMEM),   # loss
                pl.BlockSpec((tc, Dp), lambda k: (k, 0)),            # new centers
            ),
            scratch_shapes=[pltpu.SMEM((1,), jnp.float32)],          # loss accum
        ),
        input_output_aliases={2: 1},        # centers -> new_centers
        compiler_params=pltpu.CompilerParams(
            dimension_semantics=("arbitrary",),
            vmem_limit_bytes=vmem_limit),
        cost_estimate=cost,
    )(labels2d, feats_p, cents_p)

    return loss[0], new_centers[:C, :D]


def _reference(features, labels, centers, alpha):
    active = centers[labels]
    diff = active - features
    loss = jnp.mean(diff ** 2)
    counts = jnp.bincount(labels, length=centers.shape[0])[labels]
    w = 1.0 / counts.astype(jnp.float32)
    upd = diff * w[:, None] * alpha
    new_centers = centers.at[labels].add(-upd)
    return loss, new_centers


if __name__ == "__main__":
    B, D, C = 8, 32, 10
    alpha = 0.5

    key = jax.random.PRNGKey(0)
    k1, k2, k3 = jax.random.split(key, 3)
    # Deterministic synthetic parameter init (stands in for torch.randn(num_classes, dim)).
    centers = jax.random.normal(k3, (C, D), dtype=jnp.float32)
    features = jax.random.normal(k1, (B, D), dtype=jnp.float32)
    labels = jax.random.randint(k2, (B,), 0, C, dtype=jnp.int32)

    ref_loss, ref_centers = jax.block_until_ready(
        _reference(features, labels, centers, alpha))

    # Path 1: single class tile (C fits in one block).
    loss, new_centers = center_loss(features, labels, centers, alpha)
    jax.block_until_ready((loss, new_centers))
    np.testing.assert_allclose(np.asarray(loss), np.asarray(ref_loss),
                               rtol=1e-5, atol=1e-5)
    np.testing.assert_allclose(np.asarray(new_centers), np.asarray(ref_centers),
                               rtol=1e-5, atol=1e-5)

    # Path 2: force the tiled-C grid (tc=8 -> 2 tiles, padded classes) to
    # exercise the multi-step accumulation / scatter path as well.
    loss_t, new_centers_t = center_loss(features, labels, centers, alpha,
                                        max_tile_classes=8)
    jax.block_until_ready((loss_t, new_centers_t))
    np.testing.assert_allclose(np.asarray(loss_t), np.asarray(ref_loss),
                               rtol=1e-5, atol=1e-5)
    np.testing.assert_allclose(np.asarray(new_centers_t), np.asarray(ref_centers),
                               rtol=1e-5, atol=1e-5)

    print("KERNEL_OK")
</pallas_src>

<mosaic_0001>
module attributes {stable_mosaic.version = 11 : i64} {
  func.func @kernel(%arg0: i32, %arg1: memref<8x1xi32, #tpu.memory_space<vmem>>, %arg2: memref<8x128xf32, #tpu.memory_space<vmem>>, %arg3: memref<10x128xf32, #tpu.memory_space<vmem>>, %arg4: memref<1xf32, #tpu.memory_space<smem>>, %arg5: memref<10x128xf32, #tpu.memory_space<vmem>>, %arg6: memref<1xf32, #tpu.memory_space<smem>>) attributes {dimension_semantics = [#tpu.dimension_semantics<arbitrary>], iteration_bounds = array<i64: 1>, scalar_prefetch = 0 : i64, scratch_operands = 1 : i64, tpu.core_type = #tpu.core_type<tc>, window_params = [{pipeline_mode = #tpu.pipeline_mode<synchronous>, transform_indices = @transform_0, window_bounds = array<i64: 8, 1>}, {pipeline_mode = #tpu.pipeline_mode<synchronous>, transform_indices = @transform_1, window_bounds = array<i64: 8, 128>}, {transform_indices = @transform_2, window_bounds = array<i64: 10, 128>}, {transform_indices = @transform_3, window_bounds = array<i64: 1>}, {transform_indices = @transform_4, window_bounds = array<i64: 10, 128>}]} {
    %c0_i32 = arith.constant 0 : i32
    %0 = arith.cmpi eq, %arg0, %c0_i32 : i32
    %1 = arith.extui %0 : i1 to i32
    %c0_i32_0 = arith.constant 0 : i32
    %2 = arith.cmpi ne, %1, %c0_i32_0 : i32
    scf.if %2 {
      %cst_19 = arith.constant 0.000000e+00 : f32
      %c0_20 = arith.constant 0 : index
      %48 = memref.load %arg6[%c0_20] : memref<1xf32, #tpu.memory_space<smem>>
      memref.store %cst_19, %arg6[%c0_20] : memref<1xf32, #tpu.memory_space<smem>>
    } else {
    }
    %c0 = arith.constant 0 : index
    %c0_1 = arith.constant 0 : index
    %3 = vector.load %arg1[%c0, %c0_1] : memref<8x1xi32, #tpu.memory_space<vmem>>, vector<8x1xi32>
    %c10_i32 = arith.constant 10 : i32
    %4 = arith.muli %arg0, %c10_i32 : i32
    %5 = tpu.iota {dimensions = array<i32: 1>} : vector<8x10xi32>
    %6 = vector.broadcast %4 : i32 to vector<8x10xi32>
    %7 = arith.addi %6, %5 : vector<8x10xi32>
    %8 = vector.broadcast %3 : vector<8x1xi32> to vector<8x10xi32>
    %9 = arith.cmpi eq, %8, %7 : vector<8x10xi32>
    %10 = arith.extui %9 : vector<8x10xi1> to vector<8x10xi32>
    %11 = arith.sitofp %10 : vector<8x10xi32> to vector<8x10xf32>
    %12 = vector.broadcast %4 : i32 to vector<8x1xi32>
    %13 = arith.cmpi sge, %3, %12 : vector<8x1xi32>
    %c10_i32_2 = arith.constant 10 : i32
    %14 = arith.addi %4, %c10_i32_2 : i32
    %15 = vector.broadcast %14 : i32 to vector<8x1xi32>
    %16 = arith.cmpi slt, %3, %15 : vector<8x1xi32>
    %17 = arith.andi %13, %16 : vector<8x1xi1>
    %18 = arith.extui %17 : vector<8x1xi1> to vector<8x1xi32>
    %19 = arith.sitofp %18 : vector<8x1xi32> to vector<8x1xf32>
    %c0_3 = arith.constant 0 : index
    %c0_4 = arith.constant 0 : index
    %20 = vector.load %arg3[%c0_3, %c0_4] : memref<10x128xf32, #tpu.memory_space<vmem>>, vector<10x128xf32>
    %c0_5 = arith.constant 0 : index
    %c0_6 = arith.constant 0 : index
    %21 = vector.load %arg2[%c0_5, %c0_6] : memref<8x128xf32, #tpu.memory_space<vmem>>, vector<8x128xf32>
    %cst = arith.constant dense<0.000000e+00> : vector<8x128xf32>
    %22 = tpu.matmul %11, %20, %cst {dimension_numbers = #tpu.dot_dimension_numbers<[1], [0], [0], [1], [0, 0, 1, 1], [], []>} : vector<8x10xf32>, vector<10x128xf32>, vector<8x128xf32> -> vector<8x128xf32>
    %23 = vector.broadcast %19 : vector<8x1xf32> to vector<8x128xf32>
    %24 = arith.mulf %23, %21 : vector<8x128xf32>
    %25 = arith.subf %22, %24 : vector<8x128xf32>
    %c0_7 = arith.constant 0 : index
    %26 = memref.load %arg6[%c0_7] : memref<1xf32, #tpu.memory_space<smem>>
    %27 = arith.mulf %25, %25 : vector<8x128xf32>
    %28 = vector.shape_cast %27 : vector<8x128xf32> to vector<1x8x128xf32>
    %cst_8 = arith.constant dense<0.000000e+00> : vector<1xf32>
    %29 = vector.multi_reduction <add>, %28, %cst_8 [1, 2] : vector<1x8x128xf32> to vector<1xf32>
    %30 = vector.shape_cast %29 : vector<1xf32> to vector<1x1x1xf32>
    %31 = vector.extract %30[0, 0, 0] : f32 from vector<1x1x1xf32>
    %32 = arith.addf %26, %31 : f32
    %c0_9 = arith.constant 0 : index
    %33 = memref.load %arg6[%c0_9] : memref<1xf32, #tpu.memory_space<smem>>
    memref.store %32, %arg6[%c0_9] : memref<1xf32, #tpu.memory_space<smem>>
    %c0_10 = arith.constant 0 : index
    %34 = memref.load %arg6[%c0_10] : memref<1xf32, #tpu.memory_space<smem>>
    %cst_11 = arith.constant 3.906250e-03 : f32
    %35 = arith.mulf %34, %cst_11 : f32
    %c0_12 = arith.constant 0 : index
    %36 = memref.load %arg4[%c0_12] : memref<1xf32, #tpu.memory_space<smem>>
    memref.store %35, %arg4[%c0_12] : memref<1xf32, #tpu.memory_space<smem>>
    %cst_13 = arith.constant dense<0.000000e+00> : vector<10xf32>
    %37 = vector.multi_reduction <add>, %11, %cst_13 [0] : vector<8x10xf32> to vector<10xf32>
    %38 = vector.shape_cast %37 : vector<10xf32> to vector<1x10xf32>
    %cst_14 = arith.constant 1.000000e+00 : f32
    %39 = vector.broadcast %cst_14 : f32 to vector<1x10xf32>
    %40 = arith.maximumf %38, %39 : vector<1x10xf32>
    %cst_15 = arith.constant 5.000000e-01 : f32
    %41 = vector.broadcast %cst_15 : f32 to vector<1x10xf32>
    %42 = arith.divf %41, %40 : vector<1x10xf32>
    %43 = vector.broadcast %42 : vector<1x10xf32> to vector<8x10xf32>
    %44 = arith.mulf %11, %43 : vector<8x10xf32>
    %cst_16 = arith.constant dense<0.000000e+00> : vector<10x128xf32>
    %45 = tpu.matmul %44, %25, %cst_16 {dimension_numbers = #tpu.dot_dimension_numbers<[0], [0], [1], [1], [0, 1, 1, 1], [], []>} : vector<8x10xf32>, vector<8x128xf32>, vector<10x128xf32> -> vector<10x128xf32>
    %46 = arith.subf %20, %45 : vector<10x128xf32>
    %c0_17 = arith.constant 0 : index
    %c0_18 = arith.constant 0 : index
    %47 = vector.load %arg5[%c0_17, %c0_18] : memref<10x128xf32, #tpu.memory_space<vmem>>, vector<10x128xf32>
    tpu.vector_store %arg5[%c0_17, %c0_18], %46 {strides = array<i32>} : memref<10x128xf32, #tpu.memory_space<vmem>>, vector<10x128xf32>,
    return
  }
  func.func @transform_0(%arg0: i32) -> (i32, i32) {
    %c0_i32 = arith.constant 0 : i32
    %c0_i32_0 = arith.constant 0 : i32
    %c0_i32_1 = arith.constant 0 : i32
    return %c0_i32, %c0_i32_0 : i32, i32
  }
  func.func @transform_1(%arg0: i32) -> (i32, i32) {
    %c0_i32 = arith.constant 0 : i32
    %c0_i32_0 = arith.constant 0 : i32
    %c0_i32_1 = arith.constant 0 : i32
    return %c0_i32, %c0_i32_0 : i32, i32
  }
  func.func @transform_2(%arg0: i32) -> (i32, i32) {
    %c0_i32 = arith.constant 0 : i32
    %c0_i32_0 = arith.constant 0 : i32
    return %arg0, %c0_i32 : i32, i32
  }
  func.func @transform_3(%arg0: i32) -> i32 {
    %c0_i32 = arith.constant 0 : i32
    %c0_i32_0 = arith.constant 0 : i32
    return %c0_i32 : i32
  }
  func.func @transform_4(%arg0: i32) -> (i32, i32) {
    %c0_i32 = arith.constant 0 : i32
    %c0_i32_0 = arith.constant 0 : i32
    return %arg0, %c0_i32 : i32, i32
  }
}

</mosaic_0001>

<llo_original>
// kernel: tpu_custom_call.1
$region0: #{tpu_custom_call.1}
  #allocation0 [shape = 'u32[]', space=smem, size = 0x4, offset = 0x4, fixed_abs, tag = 'smem constant byte address 0x4 - core index']
  #allocation1 [shape = 'u32[144,128]{1,0:T(1,128)}', space=vmem, size = 0x12000, scoped, tag = 'internal scratch']
  #allocation2 [shape = 'f32[1]{0:T(128)}', space=smem, size = 0x200, scoped, tag = 'scratch operand']
  %s0 = inlined_call_operand.vmem [shape: s32[8,1], index: 0, kind: input, shape index: {}]
  %s1 = inlined_call_operand.vmem [shape: f32[8,128], index: 1, kind: input, shape index: {}]
  %s2 = inlined_call_operand.hbm [shape: f32[10,128], index: 2, kind: input, shape index: {}, may-alias: {2,4}]
  %s3 = inlined_call_operand.hbm [shape: f32[1], index: 3, kind: output, shape index: {0}]
  %s4 = inlined_call_operand.hbm [shape: f32[10,128], index: 4, kind: output, shape index: {1}, may-alias: {2,4}]
  %5 = xla_tuple %s3, %s4
  %s6 = sld [smem:[#allocation0]]
  $region38: #{tpu_custom_call.1} parent=0
    _
  %s8 = ssub.s32 1, %s6
  %s9 = scalar_select 0, %s8, %s6
  $region1: #{tpu_custom_call.1} parent=0
    #allocation3 [shape = 'u8[8192]{0}', space=vmem, size = 0x2000, scoped, tag = 'input window, operand 2, single buffered']
    #allocation4 [shape = 's32[1]{0}', space=sflag, size = 0x4, scoped, tag = 'scoped memory for tpu_custom_call.1']
    #allocation5 [shape = 's32[1]{0}', space=sflag, size = 0x4, scoped, tag = 'scoped memory for tpu_custom_call.1']
    #allocation6 [shape = 's32[1]{0}', space=sflag, size = 0x4, scoped, tag = 'scoped memory for tpu_custom_call.1']
    #allocation7 [shape = 'u8[512]{0}', space=smem, size = 0x200, scoped, tag = 'output window, operand 0, single buffered']
    #allocation8 [shape = 'u8[8192]{0}', space=vmem, size = 0x2000, scoped, tag = 'output window, operand 1, single buffered']
    %10 = vsyncpa [#allocation4], 0
    %11 = vsyncpa [#allocation6], 0
    %12 = vsyncpa [#allocation5], 0
    // Predicated region
    $region2: #{tpu_custom_call.1} parent=1 // pred_check
      _
    $region3: #{tpu_custom_call.1} parent=1 // pred_check_branch
      %14 = sbr.rel (0) target = $region5
    $region4: #{tpu_custom_call.1} parent=1 // pred_region
      _
    $region5: #{tpu_custom_call.1} parent=1 // pred_fallthru
      _
    // Predicated region
    $region6: #{tpu_custom_call.1} parent=1 // pred_check
      _
    $region7: #{tpu_custom_call.1} parent=1 // pred_check_branch
      %16 = sbr.rel (0) target = $region9
    $region8: #{tpu_custom_call.1} parent=1 // pred_region
      _
    $region9: #{tpu_custom_call.1} parent=1 // pred_fallthru
      _
    // Predicated region
    $region10: #{tpu_custom_call.1} parent=1 // pred_check
      _
    $region11: #{tpu_custom_call.1} parent=1 // pred_check_branch
      %18 = sbr.rel (0) target = $region13
    $region12: #{tpu_custom_call.1} parent=1 // pred_region
      %s20 = ssub.s32 256, 256
      %21 = vsyncadd [#allocation4], %s20
      %s22 = sshll.u32 [#allocation3], 4
      %s23 = int_to_ptr.vmem [resolvable:$true] %s22
      %28 = dma.hbm_to_vmem [thread:$0]  %s2, 256, %s23, [#allocation4], 128, 128, 8
    $region13: #{tpu_custom_call.1} parent=1 // pred_fallthru
      _
    // Predicated region
    $region14: #{tpu_custom_call.1} parent=1 // pred_check
      _
    $region15: #{tpu_custom_call.1} parent=1 // pred_check_branch
      %30 = sbr.rel (0) target = $region17
    $region16: #{tpu_custom_call.1} parent=1 // pred_region
      %31 = dma.done [#allocation4], 256
    $region17: #{tpu_custom_call.1} parent=1 // pred_fallthru
      _
    %p32 = scmp.eq.s32.totalorder 0, 0
    // Predicated region
    $region18: #{tpu_custom_call.1} parent=1 // pred_check
      %p33 = pneg %p32
    $region19: #{tpu_custom_call.1} parent=1 // pred_check_branch
      %35 = sbr.rel (%p33) target = $region21
    $region20: #{tpu_custom_call.1} parent=1 // pred_region
      %s36 = scalar_lea.smem [#allocation2], 0
      %37 = sst [smem:[%s36]] 0.0
    $region21: #{tpu_custom_call.1} parent=1 // pred_fallthru
      _
    %v38 = vld [vmem:[%s0] sm:$0xff]
    %s39 = smul.u32 0, 10
    %v40 = vlaneseq
    %v41 = vand.u32 %v40, 127
    %v42 = vstv %s39
    %v43 = vadd.s32 %v42, %v41
    %44 = vset.pattern.permute.xlu0 0
    %45 = vperm.xlu0 %44, %v38
    %v46 = vpop.permute.xlu0 %45
    %vm47 = vcmp.eq.s32.totalorder %v46, %v43
    %v48 = vsel %vm47, 1, 0
    %v49 = vcvt.s32.f32 %v48
    %vm50 = vcmp.ge.s32.totalorder %v38, %v42
    %s51 = sadd.s32 %s39, 10
    %v52 = vstv %s51
    %vm53 = vcmp.lt.s32.totalorder %v38, %v52
    %vm54 = vmand %vm50, %vm53
    %v55 = vsel %vm54, 1, 0
    %v56 = vcvt.s32.f32 %v55
    %v57 = vld [vmem:[#allocation3] sm:$0xff]
    %v58 = vld [vmem:[#allocation3 + $0x8] sm:$0x3]
    %v59 = vld [vmem:[%s1] sm:$0xff]
    %vm60 = vcmask 80896
    %v62 = vsel %vm60, %v49, 0
    %vm64 = vcmask 1041408
    %v66 = vsel %vm64, %v58, 0
    %68 = vmatprep.subr.mxu0 0.0
    %69 = vmatpush1.msra.mxu0 0.0
    %70 = vmatprep.subr.mxu0 0.0
    %71 = vmatpush1.msra.mxu0 0.0
    %72 = vmatprep.subr.mxu0 0.0
    %73 = vmatpush1.msra.mxu0 0.0
    %74 = vmatprep.subr.mxu0 0.0
    %75 = vmatpush1.msra.mxu0 0.0
    %76 = vmatprep.subr.mxu0 0.0
    %77 = vmatpush1.msra.mxu0 0.0
    %78 = vmatprep.subr.mxu0 0.0
    %79 = vmatpush1.msra.mxu0 0.0
    %80 = vmatprep.subr.mxu0 0.0
    %81 = vmatpush1.msra.mxu0 0.0
    %82 = vmatprep.subr.mxu0 0.0
    %83 = vmatpush1.msra.mxu0 0.0
    %84 = vmatprep.subr.mxu0 0.0
    %85 = vmatpush1.msra.mxu0 0.0
    %86 = vmatprep.subr.mxu0 0.0
    %87 = vmatpush1.msra.mxu0 0.0
    %88 = vmatprep.subr.mxu0 0.0
    %89 = vmatpush1.msra.mxu0 0.0
    %90 = vmatprep.subr.mxu0 0.0
    %91 = vmatpush1.msra.mxu0 0.0
    %92 = vmatprep.subr.mxu0 0.0
    %93 = vmatpush1.msra.mxu0 0.0
    %94 = vmatprep.subr.mxu0 0.0
    %95 = vmatpush1.msra.mxu0 0.0
    %96 = vmatprep.subr.mxu0 0.0
    %97 = vmatpush1.msra.mxu0 %v66
    %98 = vmatprep.subr.mxu0 0.0
    %99 = vmatpush1.msra.mxu0 %v57
    %100 = vmatprep.subr.mxu0 0.0
    %101 = vmatpush2.msra.mxu0 0.0
    %102 = vmatprep.subr.mxu0 0.0
    %103 = vmatpush2.msra.mxu0 0.0
    %104 = vmatprep.subr.mxu0 0.0
    %105 = vmatpush2.msra.mxu0 0.0
    %106 = vmatprep.subr.mxu0 0.0
    %107 = vmatpush2.msra.mxu0 0.0
    %108 = vmatprep.subr.mxu0 0.0
    %109 = vmatpush2.msra.mxu0 0.0
    %110 = vmatprep.subr.mxu0 0.0
    %111 = vmatpush2.msra.mxu0 0.0
    %112 = vmatprep.subr.mxu0 0.0
    %113 = vmatpush2.msra.mxu0 0.0
    %114 = vmatprep.subr.mxu0 0.0
    %115 = vmatpush2.msra.mxu0 0.0
    %116 = vmatprep.subr.mxu0 0.0
    %117 = vmatpush2.msra.mxu0 0.0
    %118 = vmatprep.subr.mxu0 0.0
    %119 = vmatpush2.msra.mxu0 0.0
    %120 = vmatprep.subr.mxu0 0.0
    %121 = vmatpush2.msra.mxu0 0.0
    %122 = vmatprep.subr.mxu0 0.0
    %123 = vmatpush2.msra.mxu0 0.0
    %124 = vmatprep.subr.mxu0 0.0
    %125 = vmatpush2.msra.mxu0 0.0
    %126 = vmatprep.subr.mxu0 0.0
    %127 = vmatpush2.msra.mxu0 0.0
    %128 = vmatprep.subr.mxu0 0.0
    %129 = vmatpush2.msra.mxu0 0.0
    %130 = vmatprep.subr.mxu0 0.0
    %131 = vmatpush2.msra.mxu0 0.0
    %132 = vmatprep.mubr.f32.mxu0 0.0
    %133 = vmatmul.mubr.f32.gmra.mxu0 %v62
    %v134 = vpop.f32.mrf.mxu0
    %v135 = vadd.f32 0.0, %v134
    %v136 = vpop.f32.mrf.mxu0
    %137 = vdwg.mxu0
    %139 = vset.pattern.permute.xlu0 0
    %140 = vperm.xlu0 %139, %v56
    %v141 = vpop.permute.xlu0 %140
    %v143 = vmul.f32 %v141, %v59
    %v144 = vsub.f32 %v135, %v143
    %s145 = sld [smem:[#allocation2]]
    %v146 = vmul.f32 %v144, %v144
    %147 = vadd.xlane.f32.xlu0 %v146
    %v148 = vpop.xlane.xlu0 %147
    %v149 = vrot.slane %v148, 4
    %v150 = vadd.f32 %v148, %v149
    %v151 = vrot.slane %v150, 2
    %v152 = vadd.f32 %v150, %v151
    %v153 = vrot.slane %v152, 1
    %v154 = vadd.f32 %v152, %v153
    %s155 = vtos %v154
    %s156 = sadd.f32 %s145, %s155
    %s157 = scalar_lea.smem [#allocation2], 0
    %158 = sst [smem:[%s157]] %s156
    %s159 = sld [smem:[#allocation2]]
    %s160 = smul.f32 %s159, 0.00390625
    %s161 = scalar_lea.smem [#allocation7], 0
    %162 = sst [smem:[%s161]] %s160
    %v163 = vsel %vm60, %v49, 0.0
    %v164 = vrot.slane %v163, 4
    %v165 = vadd.f32 %v163, %v164
    %v166 = vrot.slane %v165, 2
    %v167 = vadd.f32 %v165, %v166
    %v168 = vrot.slane %v167, 1
    %v169 = vadd.f32 %v167, %v168
    %v170 = vmax.f32 %v169, 1.0
    %v171 = vrcp.pop %v170
    %v172 = vmul.f32 0.5, %v171
    %v173 = vmul.f32 %v49, %v172
    %174 = vxpose.xlu0.b32.start [1/16] %v173, 128
    %175 = vxpose.xlu0.b32.cont [2/16] 0.0, 128
    %176 = vxpose.xlu0.b32.cont [3/16] 0.0, 128
    %177 = vxpose.xlu0.b32.cont [4/16] 0.0, 128
    %178 = vxpose.xlu0.b32.cont [5/16] 0.0, 128
    %179 = vxpose.xlu0.b32.cont [6/16] 0.0, 128
    %180 = vxpose.xlu0.b32.cont [7/16] 0.0, 128
    %181 = vxpose.xlu0.b32.cont [8/16] 0.0, 128
    %182 = vxpose.xlu0.b32.cont [9/16] 0.0, 128
    %183 = vxpose.xlu0.b32.cont [10/16] 0.0, 128
    %184 = vxpose.xlu0.b32.cont [11/16] 0.0, 128
    %185 = vxpose.xlu0.b32.cont [12/16] 0.0, 128
    %186 = vxpose.xlu0.b32.cont [13/16] 0.0, 128
    %187 = vxpose.xlu0.b32.cont [14/16] 0.0, 128
    %188 = vxpose.xlu0.b32.cont [15/16] 0.0, 128
    %189 = vxpose.xlu0.b32.end [16/16] 0.0, 128
    %v190 = vpop.trf.xlu0
    %v191 = vpop.trf.xlu0
    %v192 = vpop.trf.xlu0
    %v193 = vpop.trf.xlu0
    %v194 = vpop.trf.xlu0
    %v195 = vpop.trf.xlu0
    %v196 = vpop.trf.xlu0
    %v197 = vpop.trf.xlu0
    %v198 = vpop.trf.xlu0
    %v199 = vpop.trf.xlu0
    %v200 = vpop.trf.xlu0
    %v201 = vpop.trf.xlu0
    %v202 = vpop.trf.xlu0
    %v203 = vpop.trf.xlu0
    %v204 = vpop.trf.xlu0
    %v205 = vpop.trf.xlu0
    %vm206 = vcmask 64512
    %v208 = vsel %vm206, %v190, 0
    %v211 = vsel %vm206, %v191, 0
    %213 = vmatprep.subr.mxu0 0.0
    %214 = vmatpush1.msra.mxu0 0.0
    %215 = vmatprep.subr.mxu0 0.0
    %216 = vmatpush1.msra.mxu0 0.0
    %217 = vmatprep.subr.mxu0 0.0
    %218 = vmatpush1.msra.mxu0 0.0
    %219 = vmatprep.subr.mxu0 0.0
    %220 = vmatpush1.msra.mxu0 0.0
    %221 = vmatprep.subr.mxu0 0.0
    %222 = vmatpush1.msra.mxu0 0.0
    %223 = vmatprep.subr.mxu0 0.0
    %224 = vmatpush1.msra.mxu0 0.0
    %225 = vmatprep.subr.mxu0 0.0
    %226 = vmatpush1.msra.mxu0 0.0
    %227 = vmatprep.subr.mxu0 0.0
    %228 = vmatpush1.msra.mxu0 0.0
    %229 = vmatprep.subr.mxu0 0.0
    %230 = vmatpush1.msra.mxu0 0.0
    %231 = vmatprep.subr.mxu0 0.0
    %232 = vmatpush1.msra.mxu0 0.0
    %233 = vmatprep.subr.mxu0 0.0
    %234 = vmatpush1.msra.mxu0 0.0
    %235 = vmatprep.subr.mxu0 0.0
    %236 = vmatpush1.msra.mxu0 0.0
    %237 = vmatprep.subr.mxu0 0.0
    %238 = vmatpush1.msra.mxu0 0.0
    %239 = vmatprep.subr.mxu0 0.0
    %240 = vmatpush1.msra.mxu0 0.0
    %241 = vmatprep.subr.mxu0 0.0
    %242 = vmatpush1.msra.mxu0 0.0
    %243 = vmatprep.subr.mxu0 0.0
    %244 = vmatpush1.msra.mxu0 %v144
    %245 = vmatprep.subr.mxu0 0.0
    %246 = vmatpush2.msra.mxu0 0.0
    %247 = vmatprep.subr.mxu0 0.0
    %248 = vmatpush2.msra.mxu0 0.0
    %249 = vmatprep.subr.mxu0 0.0
    %250 = vmatpush2.msra.mxu0 0.0
    %251 = vmatprep.subr.mxu0 0.0
    %252 = vmatpush2.msra.mxu0 0.0
    %253 = vmatprep.subr.mxu0 0.0
    %254 = vmatpush2.msra.mxu0 0.0
    %255 = vmatprep.subr.mxu0 0.0
    %256 = vmatpush2.msra.mxu0 0.0
    %257 = vmatprep.subr.mxu0 0.0
    %258 = vmatpush2.msra.mxu0 0.0
    %259 = vmatprep.subr.mxu0 0.0
    %260 = vmatpush2.msra.mxu0 0.0
    %261 = vmatprep.subr.mxu0 0.0
    %262 = vmatpush2.msra.mxu0 0.0
    %263 = vmatprep.subr.mxu0 0.0
    %264 = vmatpush2.msra.mxu0 0.0
    %265 = vmatprep.subr.mxu0 0.0
    %266 = vmatpush2.msra.mxu0 0.0
    %267 = vmatprep.subr.mxu0 0.0
    %268 = vmatpush2.msra.mxu0 0.0
    %269 = vmatprep.subr.mxu0 0.0
    %270 = vmatpush2.msra.mxu0 0.0
    %271 = vmatprep.subr.mxu0 0.0
    %272 = vmatpush2.msra.mxu0 0.0
    %273 = vmatprep.subr.mxu0 0.0
    %274 = vmatpush2.msra.mxu0 0.0
    %275 = vmatprep.subr.mxu0 0.0
    %276 = vmatpush2.msra.mxu0 0.0
    %277 = vmatprep.mubr.f32.mxu0 0.0
    %278 = vmatmul.mubr.f32.gmra.mxu0 %v208
    %v279 = vpop.f32.mrf.mxu0
    %v280 = vadd.f32 0.0, %v279
    %v281 = vpop.f32.mrf.mxu0
    %282 = vmatprep.mubr.f32.mxu0 0.0
    %283 = vmatmul.mubr.f32.gmra.mxu0 %v211
    %v284 = vpop.f32.mrf.mxu0
    %v285 = vadd.f32 0.0, %v284
    %v286 = vpop.f32.mrf.mxu0
    %287 = vdwg.mxu0
    %v288 = vsub.f32 %v57, %v280
    %v289 = vsub.f32 %v58, %v285
    %290 = vst [vmem:[#allocation8] sm:$0xff] %v288
    %291 = vst [vmem:[#allocation8 + $0x8] sm:$0x3] %v289
    // Predicated region
    $region22: #{tpu_custom_call.1} parent=1 // pred_check
      _
    $region23: #{tpu_custom_call.1} parent=1 // pred_check_branch
      %293 = sbr.rel (0) target = $region25
    $region24: #{tpu_custom_call.1} parent=1 // pred_region
      %s295 = ssub.s32 16, 16
      %296 = vsyncadd [#allocation6], %s295
      %299 = dma.smem_to_hbm [#allocation7], 16, %s3, [#allocation6]
    $region25: #{tpu_custom_call.1} parent=1 // pred_fallthru
      _
    // Predicated region
    $region26: #{tpu_custom_call.1} parent=1 // pred_check
      _
    $region27: #{tpu_custom_call.1} parent=1 // pred_check_branch
      %301 = sbr.rel (0) target = $region29
    $region28: #{tpu_custom_call.1} parent=1 // pred_region
      %s303 = ssub.s32 256, 256
      %304 = vsyncadd [#allocation5], %s303
      %s305 = sshll.u32 [#allocation8], 4
      %s306 = int_to_ptr.vmem [resolvable:$true] %s305
      %311 = dma.vmem_to_hbm [thread:$0]  %s306, 256, %s4, [#allocation5], 128, 128, 8
    $region29: #{tpu_custom_call.1} parent=1 // pred_fallthru
      _
    // Predicated region
    $region30: #{tpu_custom_call.1} parent=1 // pred_check
      _
    $region31: #{tpu_custom_call.1} parent=1 // pred_check_branch
      %313 = sbr.rel (0) target = $region33
    $region32: #{tpu_custom_call.1} parent=1 // pred_region
      %314 = dma.done [#allocation6], 16
    $region33: #{tpu_custom_call.1} parent=1 // pred_fallthru
      _
    // Predicated region
    $region34: #{tpu_custom_call.1} parent=1 // pred_check
      _
    $region35: #{tpu_custom_call.1} parent=1 // pred_check_branch
      %316 = sbr.rel (0) target = $region37
    $region36: #{tpu_custom_call.1} parent=1 // pred_region
      %317 = dma.done [#allocation5], 256
    $region37: #{tpu_custom_call.1} parent=1 // pred_fallthru
      _
    %318 = sfence
    %319 = vsyncpa [#allocation4], 1
    %320 = vsyncpa [#allocation5], 1
    %321 = vsyncpa [#allocation6], 1

</llo_original>
